<compile_context>
chip_gen: v7x
topology: tpu7x:2x2x1
jax: 0.10.0
libtpu: 0.0.40
codegen_flags: <defaults>
</compile_context>

<pallas_src>
import functools

import jax
import jax.numpy as jnp
from jax import lax
from jax.experimental import pallas as pl
from jax.experimental.pallas import tpu as pltpu


def _pooling_kernel(x_ref, wk_ref, bk_ref, pooled_ref, m_scr, l_scr, acc_scr,
                    *, n_valid, tn, needs_mask):
    # x_ref:      (1, C, TN)  one spatial tile of one batch element (f32/bf16)
    # wk_ref:     (1, C)      to_k 1x1x1 conv weight (lane-dense, x dtype)
    # bk_ref:     (1, 1)      to_k bias (f32)
    # pooled_ref: (1, 1, C)   output: softmax-attention pooled features (f32)
    # m_scr/l_scr:(1, 1)      online-softmax running max / running sum
    # acc_scr:    (1, C)      running UNnormalized pooled accumulator (f32)
    nt = pl.program_id(1)

    @pl.when(nt == 0)
    def _():
        m_scr[...] = jnp.full_like(m_scr, -jnp.inf)
        l_scr[...] = jnp.zeros_like(l_scr)
        acc_scr[...] = jnp.zeros_like(acc_scr)

    x = x_ref[0]                                    # (C, TN)
    wk = wk_ref[...]                                # (1, C)

    # 1x1x1 conv to a single channel == per-position channel dot product (MXU).
    scores = jnp.dot(wk, x, preferred_element_type=jnp.float32) + bk_ref[...]  # (1, TN)

    if needs_mask:
        # Ragged N, no host-side pad: the last block over-reads past the array
        # edge and those VMEM lanes hold garbage.  Send their scores to -inf
        # (zero softmax weight) AND zero the x lanes themselves so the pooled
        # dot cannot produce 0 * NaN.  Only emitted when N % TN != 0.
        pos = nt * tn + lax.broadcasted_iota(jnp.int32, (1, tn), 1)
        valid = pos < n_valid                                       # (1, TN)
        scores = jnp.where(valid, scores, -jnp.inf)
        x = jnp.where(valid, x, jnp.zeros_like(x))

    # --- online softmax update -------------------------------------------
    m_prev = m_scr[...]                                             # (1, 1)
    m_new = jnp.maximum(m_prev, jnp.max(scores, axis=-1, keepdims=True))
    # A tile can never be fully masked (the last tile holds >= 1 valid lane),
    # so m_new is finite and alpha cannot become NaN.
    alpha = jnp.exp(m_prev - m_new)                                 # (1, 1)
    e = jnp.exp(scores - m_new)                                     # (1, TN), unnormalized
    l_scr[...] = alpha * l_scr[...] + jnp.sum(e, axis=-1, keepdims=True)
    # Unnormalized pooled update: (1, C) += e contracted with x over TN (MXU),
    # operands in x's dtype (bf16 stays bf16), accumulation in f32.
    acc_scr[...] = alpha * acc_scr[...] + lax.dot_general(
        e.astype(x.dtype), x, (((1,), (1,)), ((), ())),
        preferred_element_type=jnp.float32)
    m_scr[...] = m_new

    @pl.when(nt == pl.num_programs(1) - 1)
    def _():
        # Exact normalization: runs once per batch element on a (1, C) value,
        # so precision is free (no approx reciprocal needed).
        pooled_ref[0] = (acc_scr[...] / l_scr[...]).astype(pooled_ref.dtype)


def _pick_tile(C, N, itemsize, target_block_bytes):
    """Lane tile for the flattened spatial axis, sized by a VMEM byte budget."""
    tn = (target_block_bytes // (C * itemsize)) // 128 * 128
    tn = max(128, int(tn))
    if tn >= N:
        return N                    # single full-extent tile (always legal, no mask)
    return tn                       # multiple of 128


def global_context(x, params, *, tn=None, target_block_bytes=2 * 1024 * 1024):
    """x: (B, C, D, H, W) (NCDHW like PyTorch), f32 or bf16.
    Returns (B, dim_out, 1, 1, 1) in f32."""
    B, C, D, H, W = x.shape
    N = D * H * W
    x_flat = x.reshape(B, C, N)
    itemsize = jnp.dtype(x.dtype).itemsize

    wk = params["wk"].astype(x.dtype)               # tiny; match x for the MXU dot
    bk = params["bk"]                               # f32 bias, added post-dot
    w1, b1, w2, b2 = params["w1"], params["b1"], params["w2"], params["b2"]

    # ---- lane tile for the flattened spatial axis (VMEM-budget driven) -----
    # Target ~1-4 MiB per x block (double-buffered) -> near HBM roofline on
    # v5e/v6e/v7x alike; avoids blowing v5e's 16 MiB / v7x's 32 MiB scoped
    # defaults for large C and avoids per-step-overhead regime for tiny C.
    if tn is None:
        tn_eff = _pick_tile(C, N, itemsize, target_block_bytes)
    else:
        tn_eff = N if tn >= N else max(128, (tn // 128) * 128)
    n_tiles = pl.cdiv(N, tn_eff)
    needs_mask = (N % tn_eff) != 0                  # ragged last block (over-read + masked)

    block_bytes = C * tn_eff * itemsize
    vmem_limit = int(min(48 * 1024 * 1024,
                         max(16 * 1024 * 1024, 2 * block_bytes + 4 * 1024 * 1024)))

    kernel = functools.partial(_pooling_kernel, n_valid=N, tn=tn_eff,
                               needs_mask=needs_mask)

    cost = pl.CostEstimate(
        flops=4 * B * C * N,                        # two C*N MXU reductions
        transcendentals=B * N,                      # per-position exp
        bytes_accessed=B * C * N * itemsize + B * C * 4)

    pooled = pl.pallas_call(
        kernel,
        out_shape=jax.ShapeDtypeStruct((B, 1, C), jnp.float32),
        grid=(B, n_tiles),
        in_specs=[
            pl.BlockSpec((1, C, tn_eff), lambda b, nt: (b, 0, nt)),   # x tile
            pl.BlockSpec((1, C), lambda b, nt: (0, 0)),               # wk (resident)
            pl.BlockSpec((1, 1), lambda b, nt: (0, 0)),               # bk (resident)
        ],
        out_specs=pl.BlockSpec((1, 1, C), lambda b, nt: (b, 0, 0)),
        scratch_shapes=[
            pltpu.VMEM((1, 1), jnp.float32),   # running max
            pltpu.VMEM((1, 1), jnp.float32),   # running sum
            pltpu.VMEM((1, C), jnp.float32),   # unnormalized pooled accumulator
        ],
        compiler_params=pltpu.CompilerParams(
            dimension_semantics=("parallel", "arbitrary"),
            vmem_limit_bytes=vmem_limit),
        cost_estimate=cost,
    )(x_flat, wk, bk)

    pooled = pooled.reshape(B, C)

    # Tiny excitation MLP on (B, C): 1x1x1 convs on a 1x1x1 feature map are
    # dense layers over channels -> plain JAX (hoisted out of the kernel).
    h = pooled @ w1.T + b1                          # (B, hidden)
    h = h * jnp.tanh(jax.nn.softplus(h))            # Mish
    o = jax.nn.sigmoid(h @ w2.T + b2)               # (B, dim_out)
    return o.reshape(B, -1, 1, 1, 1)


def init_params(key, dim_in, dim_out):
    hidden = max(3, dim_out // 2)
    k1, k2, k3 = jax.random.split(key, 3)
    # 1x1x1 convs collapse to dense matrices; small vectors kept lane-dense.
    wk = jax.random.normal(k1, (1, dim_in), jnp.float32) * (1.0 / jnp.sqrt(dim_in))
    bk = jnp.full((1, 1), 0.1, jnp.float32)
    w1 = jax.random.normal(k2, (hidden, dim_in), jnp.float32) * (1.0 / jnp.sqrt(dim_in))
    b1 = jnp.full((1, hidden), 0.05, jnp.float32)
    w2 = jax.random.normal(k3, (dim_out, hidden), jnp.float32) * (1.0 / jnp.sqrt(hidden))
    b2 = jnp.full((1, dim_out), -0.05, jnp.float32)
    return {"wk": wk, "bk": bk, "w1": w1, "b1": b1, "w2": w2, "b2": b2}


def _reference(x, params):
    """Pure-JAX reference of the PyTorch forward (for verification)."""
    B, C = x.shape[:2]
    xf = x.reshape(B, C, -1).astype(jnp.float32)
    scores = jnp.einsum("bcn,c->bn", xf, params["wk"][0]) + params["bk"][0, 0]
    p = jax.nn.softmax(scores, axis=-1)
    pooled = jnp.einsum("bn,bcn->bc", p, xf)
    h = pooled @ params["w1"].T + params["b1"]
    h = h * jnp.tanh(jax.nn.softplus(h))            # Mish
    o = jax.nn.sigmoid(h @ params["w2"].T + params["b2"])
    return o.reshape(B, -1, 1, 1, 1)


if __name__ == "__main__":
    key = jax.random.PRNGKey(0)
    kx, kp, kx2 = jax.random.split(key, 3)

    B, dim_in, dim_out = 2, 4, 8
    params = init_params(kp, dim_in, dim_out)

    # Exact normalization in the kernel -> tight tolerance again.
    TOL = dict(atol=1e-4, rtol=1e-4)

    # Config 1: N = 8*8*8 = 512, auto tile -> single full-extent tile.
    D = H = W = 8
    x = jax.random.normal(kx, (B, dim_in, D, H, W), jnp.float32)
    ref = _reference(x, params)
    out = jax.block_until_ready(global_context(x, params))
    assert out.shape == (B, dim_out, 1, 1, 1)
    assert jnp.allclose(out, ref, **TOL), "mismatch vs reference (config 1, single tile)"

    # Config 2: same input, forced tn=128 -> 4 tiles, multi-tile online softmax.
    out_mt = jax.block_until_ready(global_context(x, params, tn=128))
    assert jnp.allclose(out_mt, ref, **TOL), "mismatch vs reference (config 2, multi-tile)"

    # Config 3: ragged N = 3*6*10 = 180, tn=128 -> last block over-reads the
    # array edge; in-kernel masking (no host-side pad / HBM copy) handles it.
    D2, H2, W2 = 3, 6, 10
    x2 = jax.random.normal(kx2, (B, dim_in, D2, H2, W2), jnp.float32)
    out2 = jax.block_until_ready(global_context(x2, params, tn=128))
    ref2 = _reference(x2, params)
    assert out2.shape == (B, dim_out, 1, 1, 1)
    assert jnp.allclose(out2, ref2, **TOL), "mismatch vs reference (config 3, ragged/masked)"

    # Config 4: bf16 input path (halved HBM bytes; f32 accumulation in-kernel).
    out_bf = jax.block_until_ready(global_context(x.astype(jnp.bfloat16), params))
    assert jnp.allclose(out_bf, ref, atol=5e-2, rtol=5e-2), "mismatch vs reference (config 4, bf16)"

    print("KERNEL_OK")
</pallas_src>

<mosaic_0001>
module attributes {stable_mosaic.version = 11 : i64} {
  func.func @_pooling_kernel(%arg0: i32, %arg1: i32, %arg2: memref<1x4x512xf32, #tpu.memory_space<vmem>>, %arg3: memref<1x4xf32, #tpu.memory_space<vmem>>, %arg4: memref<1x1xf32, #tpu.memory_space<vmem>>, %arg5: memref<1x1x4xf32, #tpu.memory_space<vmem>>, %arg6: memref<1x1xf32, #tpu.memory_space<vmem>>, %arg7: memref<1x1xf32, #tpu.memory_space<vmem>>, %arg8: memref<1x4xf32, #tpu.memory_space<vmem>>) attributes {dimension_semantics = [#tpu.dimension_semantics<parallel>, #tpu.dimension_semantics<arbitrary>], iteration_bounds = array<i64: 2, 1>, scalar_prefetch = 0 : i64, scratch_operands = 3 : i64, tpu.core_type = #tpu.core_type<tc>, window_params = [{transform_indices = @transform_0, window_bounds = array<i64: 1, 4, 512>}, {pipeline_mode = #tpu.pipeline_mode<synchronous>, transform_indices = @transform_1, window_bounds = array<i64: 1, 4>}, {pipeline_mode = #tpu.pipeline_mode<synchronous>, transform_indices = @transform_2, window_bounds = array<i64: 1, 1>}, {transform_indices = @transform_3, window_bounds = array<i64: 1, 1, 4>}]} {
    %c0_i32 = arith.constant 0 : i32
    %0 = arith.cmpi eq, %arg1, %c0_i32 : i32
    %1 = arith.extui %0 : i1 to i32
    %c0_i32_0 = arith.constant 0 : i32
    %2 = arith.cmpi ne, %1, %c0_i32_0 : i32
    scf.if %2 {
      %cst_24 = arith.constant 0xFF800000 : f32
      %35 = vector.broadcast %cst_24 : f32 to vector<1x1xf32>
      %c0_25 = arith.constant 0 : index
      %c0_26 = arith.constant 0 : index
      %36 = vector.load %arg6[%c0_25, %c0_26] : memref<1x1xf32, #tpu.memory_space<vmem>>, vector<1x1xf32>
      tpu.vector_store %arg6[%c0_25, %c0_26], %35 {strides = array<i32>} : memref<1x1xf32, #tpu.memory_space<vmem>>, vector<1x1xf32>,
      %cst_27 = arith.constant 0.000000e+00 : f32
      %37 = vector.broadcast %cst_27 : f32 to vector<1x1xf32>
      %c0_28 = arith.constant 0 : index
      %c0_29 = arith.constant 0 : index
      %38 = vector.load %arg7[%c0_28, %c0_29] : memref<1x1xf32, #tpu.memory_space<vmem>>, vector<1x1xf32>
      tpu.vector_store %arg7[%c0_28, %c0_29], %37 {strides = array<i32>} : memref<1x1xf32, #tpu.memory_space<vmem>>, vector<1x1xf32>,
      %cst_30 = arith.constant 0.000000e+00 : f32
      %39 = vector.broadcast %cst_30 : f32 to vector<1x4xf32>
      %c0_31 = arith.constant 0 : index
      %c0_32 = arith.constant 0 : index
      %40 = vector.load %arg8[%c0_31, %c0_32] : memref<1x4xf32, #tpu.memory_space<vmem>>, vector<1x4xf32>
      tpu.vector_store %arg8[%c0_31, %c0_32], %39 {strides = array<i32>} : memref<1x4xf32, #tpu.memory_space<vmem>>, vector<1x4xf32>,
    } else {
    }
    %c0 = arith.constant 0 : index
    %c0_1 = arith.constant 0 : index
    %c0_2 = arith.constant 0 : index
    %3 = vector.load %arg2[%c0, %c0_1, %c0_2] : memref<1x4x512xf32, #tpu.memory_space<vmem>>, vector<1x4x512xf32>
    %4 = vector.shape_cast %3 : vector<1x4x512xf32> to vector<4x512xf32>
    %c0_3 = arith.constant 0 : index
    %c0_4 = arith.constant 0 : index
    %5 = vector.load %arg3[%c0_3, %c0_4] : memref<1x4xf32, #tpu.memory_space<vmem>>, vector<1x4xf32>
    %cst = arith.constant dense<0.000000e+00> : vector<1x512xf32>
    %6 = tpu.matmul %5, %4, %cst {dimension_numbers = #tpu.dot_dimension_numbers<[1], [0], [0], [1], [0, 0, 1, 1], [], []>} : vector<1x4xf32>, vector<4x512xf32>, vector<1x512xf32> -> vector<1x512xf32>
    %c0_5 = arith.constant 0 : index
    %c0_6 = arith.constant 0 : index
    %7 = vector.load %arg4[%c0_5, %c0_6] : memref<1x1xf32, #tpu.memory_space<vmem>>, vector<1x1xf32>
    %8 = vector.broadcast %7 : vector<1x1xf32> to vector<1x512xf32>
    %9 = arith.addf %6, %8 : vector<1x512xf32>
    %c0_7 = arith.constant 0 : index
    %c0_8 = arith.constant 0 : index
    %10 = vector.load %arg6[%c0_7, %c0_8] : memref<1x1xf32, #tpu.memory_space<vmem>>, vector<1x1xf32>
    %cst_9 = arith.constant dense<0xFF800000> : vector<1xf32>
    %11 = vector.multi_reduction <maximumf>, %9, %cst_9 [1] : vector<1x512xf32> to vector<1xf32>
    %12 = vector.shape_cast %11 : vector<1xf32> to vector<1x1xf32>
    %13 = arith.maximumf %10, %12 : vector<1x1xf32>
    %14 = arith.subf %10, %13 : vector<1x1xf32>
    %15 = math.exp %14 : vector<1x1xf32>
    %16 = vector.broadcast %13 : vector<1x1xf32> to vector<1x512xf32>
    %17 = arith.subf %9, %16 : vector<1x512xf32>
    %18 = math.exp %17 : vector<1x512xf32>
    %c0_10 = arith.constant 0 : index
    %c0_11 = arith.constant 0 : index
    %19 = vector.load %arg7[%c0_10, %c0_11] : memref<1x1xf32, #tpu.memory_space<vmem>>, vector<1x1xf32>
    %20 = arith.mulf %15, %19 : vector<1x1xf32>
    %cst_12 = arith.constant dense<0.000000e+00> : vector<1xf32>
    %21 = vector.multi_reduction <add>, %18, %cst_12 [1] : vector<1x512xf32> to vector<1xf32>
    %22 = vector.shape_cast %21 : vector<1xf32> to vector<1x1xf32>
    %23 = arith.addf %20, %22 : vector<1x1xf32>
    %c0_13 = arith.constant 0 : index
    %c0_14 = arith.constant 0 : index
    %24 = vector.load %arg7[%c0_13, %c0_14] : memref<1x1xf32, #tpu.memory_space<vmem>>, vector<1x1xf32>
    tpu.vector_store %arg7[%c0_13, %c0_14], %23 {strides = array<i32>} : memref<1x1xf32, #tpu.memory_space<vmem>>, vector<1x1xf32>,
    %c0_15 = arith.constant 0 : index
    %c0_16 = arith.constant 0 : index
    %25 = vector.load %arg8[%c0_15, %c0_16] : memref<1x4xf32, #tpu.memory_space<vmem>>, vector<1x4xf32>
    %26 = vector.broadcast %15 : vector<1x1xf32> to vector<1x4xf32>
    %27 = arith.mulf %26, %25 : vector<1x4xf32>
    %cst_17 = arith.constant dense<0.000000e+00> : vector<1x4xf32>
    %28 = tpu.matmul %18, %4, %cst_17 {dimension_numbers = #tpu.dot_dimension_numbers<[1], [1], [0], [0], [0, 0, 1, 0], [], []>} : vector<1x512xf32>, vector<4x512xf32>, vector<1x4xf32> -> vector<1x4xf32>
    %29 = arith.addf %27, %28 : vector<1x4xf32>
    %c0_18 = arith.constant 0 : index
    %c0_19 = arith.constant 0 : index
    %30 = vector.load %arg8[%c0_18, %c0_19] : memref<1x4xf32, #tpu.memory_space<vmem>>, vector<1x4xf32>
    tpu.vector_store %arg8[%c0_18, %c0_19], %29 {strides = array<i32>} : memref<1x4xf32, #tpu.memory_space<vmem>>, vector<1x4xf32>,
    %c0_20 = arith.constant 0 : index
    %c0_21 = arith.constant 0 : index
    %31 = vector.load %arg6[%c0_20, %c0_21] : memref<1x1xf32, #tpu.memory_space<vmem>>, vector<1x1xf32>
    tpu.vector_store %arg6[%c0_20, %c0_21], %13 {strides = array<i32>} : memref<1x1xf32, #tpu.memory_space<vmem>>, vector<1x1xf32>,
    %c0_i32_22 = arith.constant 0 : i32
    %32 = arith.cmpi eq, %arg1, %c0_i32_22 : i32
    %33 = arith.extui %32 : i1 to i32
    %c0_i32_23 = arith.constant 0 : i32
    %34 = arith.cmpi ne, %33, %c0_i32_23 : i32
    scf.if %34 {
      %c0_24 = arith.constant 0 : index
      %c0_25 = arith.constant 0 : index
      %35 = vector.load %arg8[%c0_24, %c0_25] : memref<1x4xf32, #tpu.memory_space<vmem>>, vector<1x4xf32>
      %c0_26 = arith.constant 0 : index
      %c0_27 = arith.constant 0 : index
      %36 = vector.load %arg7[%c0_26, %c0_27] : memref<1x1xf32, #tpu.memory_space<vmem>>, vector<1x1xf32>
      %37 = vector.broadcast %36 : vector<1x1xf32> to vector<1x4xf32>
      %38 = arith.divf %35, %37 : vector<1x4xf32>
      %c0_28 = arith.constant 0 : index
      %c0_29 = arith.constant 0 : index
      %c0_30 = arith.constant 0 : index
      %39 = vector.load %arg5[%c0_28, %c0_29, %c0_30] : memref<1x1x4xf32, #tpu.memory_space<vmem>>, vector<1x1x4xf32>
      %40 = vector.shape_cast %39 : vector<1x1x4xf32> to vector<1x4xf32>
      %41 = vector.shape_cast %38 : vector<1x4xf32> to vector<1x1x4xf32>
      tpu.vector_store %arg5[%c0_28, %c0_29, %c0_30], %41 {strides = array<i32>} : memref<1x1x4xf32, #tpu.memory_space<vmem>>, vector<1x1x4xf32>,
    } else {
    }
    return
  }
  func.func @transform_0(%arg0: i32, %arg1: i32) -> (i32, i32, i32) {
    %c0_i32 = arith.constant 0 : i32
    %c0_i32_0 = arith.constant 0 : i32
    return %arg0, %c0_i32, %arg1 : i32, i32, i32
  }
  func.func @transform_1(%arg0: i32, %arg1: i32) -> (i32, i32) {
    %c0_i32 = arith.constant 0 : i32
    %c0_i32_0 = arith.constant 0 : i32
    %c0_i32_1 = arith.constant 0 : i32
    return %c0_i32, %c0_i32_0 : i32, i32
  }
  func.func @transform_2(%arg0: i32, %arg1: i32) -> (i32, i32) {
    %c0_i32 = arith.constant 0 : i32
    %c0_i32_0 = arith.constant 0 : i32
    %c0_i32_1 = arith.constant 0 : i32
    return %c0_i32, %c0_i32_0 : i32, i32
  }
  func.func @transform_3(%arg0: i32, %arg1: i32) -> (i32, i32, i32) {
    %c0_i32 = arith.constant 0 : i32
    %c0_i32_0 = arith.constant 0 : i32
    %c0_i32_1 = arith.constant 0 : i32
    return %arg0, %c0_i32, %c0_i32_0 : i32, i32, i32
  }
}

</mosaic_0001>

<llo_original>
// kernel: tpu_custom_call.1
$region0: #{tpu_custom_call.1}
  #allocation0 [shape = 'u32[]', space=smem, size = 0x4, offset = 0x4, fixed_abs, tag = 'smem constant byte address 0x4 - core index']
  #allocation1 [shape = 'u32[144,128]{1,0:T(1,128)}', space=vmem, size = 0x12000, scoped, tag = 'internal scratch']
  #allocation2 [shape = 'f32[1,1]{1,0:T(1,128)}', space=vmem, size = 0x200, scoped, tag = 'scratch operand']
  #allocation3 [shape = 'f32[1,1]{1,0:T(1,128)}', space=vmem, size = 0x200, scoped, tag = 'scratch operand']
  #allocation4 [shape = 'f32[1,4]{1,0:T(1,128)}', space=vmem, size = 0x200, scoped, tag = 'scratch operand']
  #allocation5 [shape = 'f32[1,1]{1,0:T(1,128)S(1)}', space=vmem, size = 0x200, scoped, tag = 'scoped memory for tpu_custom_call.1']
  %s0 = inlined_call_operand.hbm [shape: f32[2,4,512], index: 0, kind: input, shape index: {}]
  %s1 = inlined_call_operand.vmem [shape: f32[1,4], index: 1, kind: input, shape index: {}]
  %s2 = inlined_call_operand.<no memory space> [shape: f32[1,1], index: 2, kind: input, shape index: {}]
  %s3 = inlined_call_operand.hbm [shape: f32[2,1,4], index: 3, kind: output, shape index: {}]
  %s4 = sld [smem:[#allocation0]]
  $region57: #{tpu_custom_call.1} parent=0
    _
  %s6 = ssub.s32 1, %s4
  %s7 = scalar_select 0, %s6, %s4
  %v8 = vstv %s2
  %9 = vst [vmem:[#allocation5] sm:$0x1] %v8
  $region1: #{tpu_custom_call.1} parent=0
    #allocation6 [shape = 'u8[16384]{0}', space=vmem, size = 0x4000, scoped, tag = 'input window, operand 0']
    #allocation7 [shape = 's32[2]{0}', space=sflag, size = 0x8, scoped, tag = 'scoped memory for tpu_custom_call.1']
    #allocation8 [shape = 's32[2]{0}', space=sflag, size = 0x8, scoped, tag = 'scoped memory for tpu_custom_call.1']
    #allocation9 [shape = 'u8[1024]{0}', space=vmem, size = 0x400, scoped, tag = 'output window, operand 0']
    %10 = vsyncpa [#allocation7], 0
    %s11 = scalar_lea.sflag [#allocation7], 1
    %12 = vsyncpa %s11, 0
    %13 = vsyncpa [#allocation8], 0
    %s14 = scalar_lea.sflag [#allocation8], 1
    %15 = vsyncpa %s14, 0
    loop: start=0, step=1, limit=4
    $region2: #{tpu_custom_call.1} parent=1 // loop_pre_header
      _
    $region3: #{tpu_custom_call.1} parent=1 // loop_header
      %s17 = sphi 0, %s21
      %p18 = scmp.ge.s32.totalorder %s17, 4
      %s24 = sphi 0, %s36
      %s25 = sphi 0, %s32
      %s26 = sphi 0, %s24
      %s27 = sphi 0, %s25
      %s28 = sphi 0, %s26
      %s29 = sphi 0, %s27
      %s41 = sphi 0, %s43
      %s44 = sphi 0, %s41
      %s45 = sphi 0, %s44
      %s61 = sphi 0, %s45
      %s65 = sphi 0, %s65
      %s67 = sphi 0, %s65
      %s68 = sphi 0, %s67
      %s82 = sphi 0, %s68
      %s86 = sphi 0, %s86
      %s88 = sphi 0, %s86
      %s89 = sphi 0, %s88
      %s103 = sphi 0, %s89
      %s109 = sphi 0, %s111
      %s112 = sphi 0, %s109
      %s113 = sphi 0, %s112
      %s129 = sphi 0, %s113
    $region4: #{tpu_custom_call.1} parent=1 // loop_header_branch
      %20 = sbr.rel (%p18) target = $region8
    $region5: #{tpu_custom_call.1} parent=1 // loop_body
      %s22 = ssub.s32 %s17, 1
      %s23 = ssub.s32 %s17, 2
      %s30 = sadd.s32 1, %s25
      %p31 = scmp.ge.s32.totalorder %s30, 1
      %s32 = scalar_select %p31, 0, %s30
      %s33 = sadd.s32 1, %s24
      %s34 = scalar_select %p31, %s33, %s24
      %p35 = scmp.ge.s32.totalorder %s34, 2
      %s36 = scalar_select %p35, 0, %s34
      %s37 = ssub.s32 %s24, %s36
      %s38 = ssub.s32 %s25, %s32
      %s39 = sor.u32 %s37, %s38
      %p40 = scmp.eq.s32.totalorder %s39, 0
      %s42 = sadd.s32 %s41, 1
      %s43 = scalar_select %p40, %s41, %s42
      %p46 = pneg %p40
      %p47 = scmp.eq.s32.totalorder %s17, 1
      %p48 = por %p46, %p47
      %p49 = scmp.ne.s32.totalorder %s41, %s44
      %p50 = scmp.eq.s32.totalorder %s17, 0
      %p51 = por %p49, %p50
      %p52 = scmp.ne.s32.totalorder %s41, %s44
      %p53 = scmp.eq.s32.totalorder %s22, 1
      %p54 = por %p52, %p53
      %p55 = scmp.ne.s32.totalorder %s44, %s45
      %p56 = scmp.eq.s32.totalorder %s22, 0
      %p57 = por %p55, %p56
      %p58 = scmp.ne.s32.totalorder %s44, %s45
      %p59 = scmp.eq.s32.totalorder %s23, 1
      %p60 = por %p58, %p59
      %p62 = scmp.ne.s32.totalorder %s45, %s61
      %p63 = scmp.eq.s32.totalorder %s23, 0
      %p64 = por %p62, %p63
      %s66 = sadd.s32 %s65, 1
      %p69 = scmp.eq.s32.totalorder %s17, 1
      %p70 = scmp.ne.s32.totalorder %s65, %s67
      %p71 = scmp.eq.s32.totalorder %s17, 0
      %p72 = por %p70, %p71
      %p73 = scmp.ne.s32.totalorder %s65, %s67
      %p74 = scmp.eq.s32.totalorder %s22, 1
      %p75 = por %p73, %p74
      %p76 = scmp.ne.s32.totalorder %s67, %s68
      %p77 = scmp.eq.s32.totalorder %s22, 0
      %p78 = por %p76, %p77
      %p79 = scmp.ne.s32.totalorder %s67, %s68
      %p80 = scmp.eq.s32.totalorder %s23, 1
      %p81 = por %p79, %p80
      %p83 = scmp.ne.s32.totalorder %s68, %s82
      %p84 = scmp.eq.s32.totalorder %s23, 0
      %p85 = por %p83, %p84
      %s87 = sadd.s32 %s86, 1
      %p90 = scmp.eq.s32.totalorder %s17, 1
      %p91 = scmp.ne.s32.totalorder %s86, %s88
      %p92 = scmp.eq.s32.totalorder %s17, 0
      %p93 = por %p91, %p92
      %p94 = scmp.ne.s32.totalorder %s86, %s88
      %p95 = scmp.eq.s32.totalorder %s22, 1
      %p96 = por %p94, %p95
      %p97 = scmp.ne.s32.totalorder %s88, %s89
      %p98 = scmp.eq.s32.totalorder %s22, 0
      %p99 = por %p97, %p98
      %p100 = scmp.ne.s32.totalorder %s88, %s89
      %p101 = scmp.eq.s32.totalorder %s23, 1
      %p102 = por %p100, %p101
      %p104 = scmp.ne.s32.totalorder %s89, %s103
      %p105 = scmp.eq.s32.totalorder %s23, 0
      %p106 = por %p104, %p105
      %s107 = ssub.s32 %s24, %s36
      %p108 = scmp.eq.s32.totalorder %s107, 0
      %s110 = sadd.s32 %s109, 1
      %s111 = scalar_select %p108, %s109, %s110
      %p114 = pneg %p108
      %p115 = scmp.eq.s32.totalorder %s17, 1
      %p116 = por %p114, %p115
      %p117 = scmp.ne.s32.totalorder %s109, %s112
      %p118 = scmp.eq.s32.totalorder %s17, 0
      %p119 = por %p117, %p118
      %p120 = scmp.ne.s32.totalorder %s109, %s112
      %p121 = scmp.eq.s32.totalorder %s22, 1
      %p122 = por %p120, %p121
      %p123 = scmp.ne.s32.totalorder %s112, %s113
      %p124 = scmp.eq.s32.totalorder %s22, 0
      %p125 = por %p123, %p124
      %p126 = scmp.ne.s32.totalorder %s112, %s113
      %p127 = scmp.eq.s32.totalorder %s23, 1
      %p128 = por %p126, %p127
      %p130 = scmp.ne.s32.totalorder %s113, %s129
      %p131 = scmp.eq.s32.totalorder %s23, 0
      %p132 = por %p130, %p131
      %p133 = scmp.le.s32.totalorder 1, %s17
      %p134 = scmp.lt.s32.totalorder %s17, 3
      %p135 = pnand %p133, %p134
      %p136 = pneg %p135
      // Predicated region
      $region9: #{tpu_custom_call.1} parent=5 // pred_check
        _
      $region10: #{tpu_custom_call.1} parent=5 // pred_check_branch
        %138 = sbr.rel (%p135) target = $region12
      $region11: #{tpu_custom_call.1} parent=5 // pred_region
        %s139 = ssub.s32 %s17, 1
        // Predicated region
        $region13: #{tpu_custom_call.1} parent=11 // pred_check
          %p140 = pneg %p78
        $region14: #{tpu_custom_call.1} parent=11 // pred_check_branch
          %142 = sbr.rel (%p140) target = $region16
        $region15: #{tpu_custom_call.1} parent=11 // pred_region
          _
        $region16: #{tpu_custom_call.1} parent=11 // pred_fallthru
          _
        // Predicated region
        $region17: #{tpu_custom_call.1} parent=11 // pred_check
          %p143 = pneg %p99
        $region18: #{tpu_custom_call.1} parent=11 // pred_check_branch
          %145 = sbr.rel (%p143) target = $region20
        $region19: #{tpu_custom_call.1} parent=11 // pred_region
          _
        $region20: #{tpu_custom_call.1} parent=11 // pred_fallthru
          _
      $region12: #{tpu_custom_call.1} parent=5 // pred_fallthru
        _
      %p146 = scmp.lt.s32.totalorder %s17, 2
      // Predicated region
      $region21: #{tpu_custom_call.1} parent=5 // pred_check
        %p147 = pneg %p146
      $region22: #{tpu_custom_call.1} parent=5 // pred_check_branch
        %149 = sbr.rel (%p147) target = $region24
      $region23: #{tpu_custom_call.1} parent=5 // pred_region
        // Predicated region
        $region25: #{tpu_custom_call.1} parent=23 // pred_check
          %p150 = pneg %p51
        $region26: #{tpu_custom_call.1} parent=23 // pred_check_branch
          %152 = sbr.rel (%p150) target = $region28
        $region27: #{tpu_custom_call.1} parent=23 // pred_region
          %s153 = sand.u32 %s41, 1
          %s154 = scalar_lea.sflag [#allocation7], %s153
          %s155 = sand.u32 %s41, 1
          %s156 = smul.addr %s155, 16
          %s157 = scalar_lea.vmem [#allocation6], %s156
          %s158 = smul.u32 4, %s25
          %s160 = ssub.s32 256, 256
          %161 = vsyncadd %s154, %s160
          %s162 = smul.addr %s24, 4
          %s163 = sadd.s32 %s158, %s162
          %s164 = smul.addr %s163, 64
          %s165 = scalar_lea.hbm %s0, %s164
          %s167 = sshll.u32 %s157, 4
          %s168 = int_to_ptr.vmem [resolvable:$true] %s167
          %170 = dma.hbm_to_vmem [thread:$0]  %s165, 256, %s168, %s154
        $region28: #{tpu_custom_call.1} parent=23 // pred_fallthru
          _
      $region24: #{tpu_custom_call.1} parent=5 // pred_fallthru
        _
      %p171 = scmp.le.s32.totalorder 1, %s17
      %p172 = scmp.lt.s32.totalorder %s17, 3
      %p173 = pnand %p171, %p172
      %p174 = pneg %p173
      // Predicated region
      $region29: #{tpu_custom_call.1} parent=5 // pred_check
        _
      $region30: #{tpu_custom_call.1} parent=5 // pred_check_branch
        %176 = sbr.rel (%p173) target = $region32
      $region31: #{tpu_custom_call.1} parent=5 // pred_region
        %s177 = ssub.s32 %s17, 1
        %s178 = sand.u32 %s44, 1
        %s179 = scalar_lea.sflag [#allocation7], %s178
        %s180 = sand.u32 %s44, 1
        %s181 = smul.addr %s180, 16
        %s182 = scalar_lea.vmem [#allocation6], %s181
        // Predicated region
        $region33: #{tpu_custom_call.1} parent=31 // pred_check
          %p183 = pneg %p57
        $region34: #{tpu_custom_call.1} parent=31 // pred_check_branch
          %185 = sbr.rel (%p183) target = $region36
        $region35: #{tpu_custom_call.1} parent=31 // pred_region
          %186 = dma.done %s179, 256
        $region36: #{tpu_custom_call.1} parent=31 // pred_fallthru
          _
        %s187 = sand.u32 %s44, 1
        %s188 = scalar_lea.sflag [#allocation7], %s187
        %s189 = sand.u32 %s44, 1
        %s190 = smul.addr %s189, 16
        %s191 = scalar_lea.vmem [#allocation6], %s190
        %p192 = pneg %p57
        %p193 = pneg %p54
        %p194 = pneg %p78
        %p195 = pneg %p75
        %p196 = pneg %p99
        %p197 = pneg %p96
        %p198 = pneg %p125
        %p199 = pneg %p122
        %s200 = sand.u32 %s112, 1
        %s201 = scalar_lea.sflag [#allocation8], %s200
        %s202 = sand.u32 %s112, 1
        %s203 = scalar_lea.vmem [#allocation9], %s202
        %s204 = smul.u32 4, %s27
        %p205 = scmp.eq.s32.totalorder %s27, 0
        // Predicated region
        $region37: #{tpu_custom_call.1} parent=31 // pred_check
          %p206 = pneg %p205
        $region38: #{tpu_custom_call.1} parent=31 // pred_check_branch
          %208 = sbr.rel (%p206) target = $region40
        $region39: #{tpu_custom_call.1} parent=31 // pred_region
          %vm209 = vcmask 0
          %210 = vst.msk [vmem:[#allocation2] sm:$0x1] %vm209, -inf
          %211 = vst.msk [vmem:[#allocation3] sm:$0x1] %vm209, 0.0
          %vm212 = vcmask 24576
          %213 = vst.msk [vmem:[#allocation4] sm:$0x1] %vm212, 0.0
        $region40: #{tpu_custom_call.1} parent=31 // pred_fallthru
          _
        %v214 = vld [vmem:[%s182] sm:$0xff]
        %v215 = vld [vmem:[%s182 + $0x8] sm:$0xff]
        %v216 = vld [vmem:[%s1] sm:$0x1]
        %v217 = vld [vmem:[#allocation5] sm:$0x1]
        %219 = vset.pattern.permute.xlu0 0
        %220 = vperm.xlu0 %219, %v217
        %v221 = vpop.permute.xlu0 %220
        %v223 = vlaneseq
        %v224 = vshrl.u32 %v223, 7
        %v225 = vsub.s32 0, %v224
        %v226 = vrot.slane %v221, %v225
        %v229 = vcombine.high %v214, %v214
        %v230 = vcombine.high %v215, %v215
        %vm231 = vcmask 31744
        %v233 = vsel %vm231, %v216, 0
        %vm235 = vcmask 1043456
        %v236 = vsel %vm235, %v214, 0
        %v238 = vsel %vm235, %v229, 0
        %v240 = vsel %vm235, %v215, 0
        %v242 = vsel %vm235, %v230, 0
        %244 = vmatprep.subr.mxu0 %v238
        %245 = vmatpush1.msra.mxu0 %v236
        %246 = vmatprep.subr.mxu0 0.0
        %247 = vmatpush1.msra.mxu0 0.0
        %248 = vmatprep.subr.mxu0 0.0
        %249 = vmatpush1.msra.mxu0 0.0
        %250 = vmatprep.subr.mxu0 0.0
        %251 = vmatpush1.msra.mxu0 0.0
        %252 = vmatprep.subr.mxu0 0.0
        %253 = vmatpush1.msra.mxu0 0.0
        %254 = vmatprep.subr.mxu0 0.0
        %255 = vmatpush1.msra.mxu0 0.0
        %256 = vmatprep.subr.mxu0 0.0
        %257 = vmatpush1.msra.mxu0 0.0
        %258 = vmatprep.subr.mxu0 0.0
        %259 = vmatpush1.msra.mxu0 0.0
        %260 = vmatprep.subr.mxu0 0.0
        %261 = vmatpush1.msra.mxu0 0.0
        %262 = vmatprep.subr.mxu0 0.0
        %263 = vmatpush1.msra.mxu0 0.0
        %264 = vmatprep.subr.mxu0 0.0
        %265 = vmatpush1.msra.mxu0 0.0
        %266 = vmatprep.subr.mxu0 0.0
        %267 = vmatpush1.msra.mxu0 0.0
        %268 = vmatprep.subr.mxu0 0.0
        %269 = vmatpush1.msra.mxu0 0.0
        %270 = vmatprep.subr.mxu0 0.0
        %271 = vmatpush1.msra.mxu0 0.0
        %272 = vmatprep.subr.mxu0 0.0
        %273 = vmatpush1.msra.mxu0 0.0
        %274 = vmatprep.subr.mxu0 0.0
        %275 = vmatpush1.msra.mxu0 0.0
        %276 = vmatprep.subr.mxu0 0.0
        %277 = vmatpush1.msra.mxu0 0.0
        %278 = vmatprep.subr.mxu0 0.0
        %279 = vmatpush1.msra.mxu0 0.0
        %280 = vmatprep.subr.mxu0 0.0
        %281 = vmatpush1.msra.mxu0 0.0
        %282 = vmatprep.subr.mxu0 0.0
        %283 = vmatpush1.msra.mxu0 0.0
        %284 = vmatprep.subr.mxu0 0.0
        %285 = vmatpush1.msra.mxu0 0.0
        %286 = vmatprep.subr.mxu0 0.0
        %287 = vmatpush1.msra.mxu0 0.0
        %288 = vmatprep.subr.mxu0 0.0
        %289 = vmatpush1.msra.mxu0 0.0
        %290 = vmatprep.subr.mxu0 0.0
        %291 = vmatpush1.msra.mxu0 0.0
        %292 = vmatprep.subr.mxu0 0.0
        %293 = vmatpush1.msra.mxu0 0.0
        %294 = vmatprep.subr.mxu0 0.0
        %295 = vmatpush1.msra.mxu0 0.0
        %296 = vmatprep.subr.mxu0 0.0
        %297 = vmatpush1.msra.mxu0 0.0
        %298 = vmatprep.subr.mxu0 0.0
        %299 = vmatpush1.msra.mxu0 0.0
        %300 = vmatprep.subr.mxu0 0.0
        %301 = vmatpush1.msra.mxu0 0.0
        %302 = vmatprep.subr.mxu0 0.0
        %303 = vmatpush1.msra.mxu0 0.0
        %304 = vmatprep.subr.mxu0 0.0
        %305 = vmatpush1.msra.mxu0 0.0
        %306 = vmatprep.subr.mxu0 0.0
        %307 = vmatpush1.msra.mxu0 0.0
        %308 = vmatprep.mubr.f32.mxu0 0.0
        %309 = vmatmul.mubr.f32.gmra.mrb[0].mxu0 %v233
        %v310 = vpop.f32.mrb[0].mxu0
        %v311 = vadd.f32 %v226, %v310
        %v312 = vpop.f32.mrb[0].mxu0
        %v313 = vadd.f32 %v226, %v312
        %314 = vdwg.mxu0
        %315 = vmatprep.subr.mxu0 %v242
        %316 = vmatpush1.msra.mxu0 %v240
        %317 = vmatprep.subr.mxu0 0.0
        %318 = vmatpush1.msra.mxu0 0.0
        %319 = vmatprep.subr.mxu0 0.0
        %320 = vmatpush1.msra.mxu0 0.0
        %321 = vmatprep.subr.mxu0 0.0
        %322 = vmatpush1.msra.mxu0 0.0
        %323 = vmatprep.subr.mxu0 0.0
        %324 = vmatpush1.msra.mxu0 0.0
        %325 = vmatprep.subr.mxu0 0.0
        %326 = vmatpush1.msra.mxu0 0.0
        %327 = vmatprep.subr.mxu0 0.0
        %328 = vmatpush1.msra.mxu0 0.0
        %329 = vmatprep.subr.mxu0 0.0
        %330 = vmatpush1.msra.mxu0 0.0
        %331 = vmatprep.subr.mxu0 0.0
        %332 = vmatpush1.msra.mxu0 0.0
        %333 = vmatprep.subr.mxu0 0.0
        %334 = vmatpush1.msra.mxu0 0.0
        %335 = vmatprep.subr.mxu0 0.0
        %336 = vmatpush1.msra.mxu0 0.0
        %337 = vmatprep.subr.mxu0 0.0
        %338 = vmatpush1.msra.mxu0 0.0
        %339 = vmatprep.subr.mxu0 0.0
        %340 = vmatpush1.msra.mxu0 0.0
        %341 = vmatprep.subr.mxu0 0.0
        %342 = vmatpush1.msra.mxu0 0.0
        %343 = vmatprep.subr.mxu0 0.0
        %344 = vmatpush1.msra.mxu0 0.0
        %345 = vmatprep.subr.mxu0 0.0
        %346 = vmatpush1.msra.mxu0 0.0
        %347 = vmatprep.subr.mxu0 0.0
        %348 = vmatpush1.msra.mxu0 0.0
        %349 = vmatprep.subr.mxu0 0.0
        %350 = vmatpush1.msra.mxu0 0.0
        %351 = vmatprep.subr.mxu0 0.0
        %352 = vmatpush1.msra.mxu0 0.0
        %353 = vmatprep.subr.mxu0 0.0
        %354 = vmatpush1.msra.mxu0 0.0
        %355 = vmatprep.subr.mxu0 0.0
        %356 = vmatpush1.msra.mxu0 0.0
        %357 = vmatprep.subr.mxu0 0.0
        %358 = vmatpush1.msra.mxu0 0.0
        %359 = vmatprep.subr.mxu0 0.0
        %360 = vmatpush1.msra.mxu0 0.0
        %361 = vmatprep.subr.mxu0 0.0
        %362 = vmatpush1.msra.mxu0 0.0
        %363 = vmatprep.subr.mxu0 0.0
        %364 = vmatpush1.msra.mxu0 0.0
        %365 = vmatprep.subr.mxu0 0.0
        %366 = vmatpush1.msra.mxu0 0.0
        %367 = vmatprep.subr.mxu0 0.0
        %368 = vmatpush1.msra.mxu0 0.0
        %369 = vmatprep.subr.mxu0 0.0
        %370 = vmatpush1.msra.mxu0 0.0
        %371 = vmatprep.subr.mxu0 0.0
        %372 = vmatpush1.msra.mxu0 0.0
        %373 = vmatprep.subr.mxu0 0.0
        %374 = vmatpush1.msra.mxu0 0.0
        %375 = vmatprep.subr.mxu0 0.0
        %376 = vmatpush1.msra.mxu0 0.0
        %377 = vmatprep.subr.mxu0 0.0
        %378 = vmatpush1.msra.mxu0 0.0
        %379 = vmatprep.mubr.f32.mxu0 0.0
        %380 = vmatmul.mubr.f32.gmra.mrb[0].mxu0 %v233
        %v381 = vpop.f32.mrb[0].mxu0
        %v382 = vadd.f32 %v226, %v381
        %v383 = vpop.f32.mrb[0].mxu0
        %v384 = vadd.f32 %v226, %v383
        %385 = vdwg.mxu0
        %v386 = vld [vmem:[#allocation2] sm:$0x1]
        %vm387 = vcmask 1040384
        %v388 = vsel %vm387, %v311, -inf
        %v389 = vsel %vm387, %v313, -inf
        %v390 = vsel %vm387, %v382, -inf
        %v391 = vsel %vm387, %v384, -inf
        %v392 = vmax.f32 %v388, %v389
        %v393 = vmax.f32 %v390, %v391
        %v394 = vmax.f32 %v392, %v393
        %395 = vmax.xlane.f32.xlu0 %v394
        %v396 = vpop.xlane.xlu0 %395
        %v397 = vmax.f32 %v386, %v396
        %v398 = vsub.f32 %v386, %v397
        %v399 = vmul.f32 %v398, 1.442695
        %v400 = vpow.pop %v399
        %402 = vset.pattern.permute.xlu0 0
        %403 = vperm.xlu0 %402, %v397
        %v404 = vpop.permute.xlu0 %403
        %v406 = vlaneseq
        %v407 = vshrl.u32 %v406, 7
        %v408 = vsub.s32 0, %v407
        %v409 = vrot.slane %v404, %v408
        %v410 = vsub.f32 %v311, %v409
        %v411 = vsub.f32 %v313, %v409
        %v412 = vsub.f32 %v382, %v409
        %v413 = vsub.f32 %v384, %v409
        %v414 = vmul.f32 %v410, 1.442695
        %v415 = vpow.pop %v414
        %v416 = vmul.f32 %v411, 1.442695
        %v417 = vpow.pop %v416
        %v418 = vmul.f32 %v412, 1.442695
        %v419 = vpow.pop %v418
        %v420 = vmul.f32 %v413, 1.442695
        %v421 = vpow.pop %v420
        %v422 = vld [vmem:[#allocation3] sm:$0x1]
        %v423 = vmul.f32 %v400, %v422
        %v424 = vsel %vm387, %v415, 0.0
        %v425 = vsel %vm387, %v417, 0.0
        %v426 = vadd.f32 %v424, %v425
        %v427 = vsel %vm387, %v419, 0.0
        %v428 = vadd.f32 %v426, %v427
        %v429 = vsel %vm387, %v421, 0.0
        %v430 = vadd.f32 %v428, %v429
        %431 = vadd.xlane.f32.xlu0 %v430
        %v432 = vpop.xlane.xlu0 %431
        %v433 = vadd.f32 %v423, %v432
        %vm434 = vcmask 0
        %435 = vst.msk [vmem:[#allocation3] sm:$0x1] %vm434, %v433
        %v436 = vld [vmem:[#allocation4] sm:$0x1]
        %438 = vset.pattern.permute.xlu0 0
        %439 = vperm.xlu0 %438, %v400
        %v440 = vpop.permute.xlu0 %439
        %v442 = vlaneseq
        %v443 = vshrl.u32 %v442, 7
        %v444 = vsub.s32 0, %v443
        %v445 = vrot.slane %v440, %v444
        %v446 = vmul.f32 %v445, %v436
        %449 = vmatprep.subr.mxu0 %v229
        %450 = vmatpush1.xpose.msra.mxu0 %v214
        %451 = vmatprep.subr.mxu0 0.0
        %452 = vmatpush1.xpose.msra.mxu0 0.0
        %453 = vmatprep.subr.mxu0 0.0
        %454 = vmatpush1.xpose.msra.mxu0 0.0
        %455 = vmatprep.subr.mxu0 0.0
        %456 = vmatpush1.xpose.msra.mxu0 0.0
        %457 = vmatprep.subr.mxu0 0.0
        %458 = vmatpush1.xpose.msra.mxu0 0.0
        %459 = vmatprep.subr.mxu0 0.0
        %460 = vmatpush1.xpose.msra.mxu0 0.0
        %461 = vmatprep.subr.mxu0 0.0
        %462 = vmatpush1.xpose.msra.mxu0 0.0
        %463 = vmatprep.subr.mxu0 0.0
        %464 = vmatpush1.xpose.msra.mxu0 0.0
        %465 = vmatprep.subr.mxu0 0.0
        %466 = vmatpush1.xpose.msra.mxu0 0.0
        %467 = vmatprep.subr.mxu0 0.0
        %468 = vmatpush1.xpose.msra.mxu0 0.0
        %469 = vmatprep.subr.mxu0 0.0
        %470 = vmatpush1.xpose.msra.mxu0 0.0
        %471 = vmatprep.subr.mxu0 0.0
        %472 = vmatpush1.xpose.msra.mxu0 0.0
        %473 = vmatprep.subr.mxu0 0.0
        %474 = vmatpush1.xpose.msra.mxu0 0.0
        %475 = vmatprep.subr.mxu0 0.0
        %476 = vmatpush1.xpose.msra.mxu0 0.0
        %477 = vmatprep.subr.mxu0 0.0
        %478 = vmatpush1.xpose.msra.mxu0 0.0
        %479 = vmatprep.subr.mxu0 0.0
        %480 = vmatpush1.xpose.msra.mxu0 0.0
        %481 = vmatprep.subr.mxu0 0.0
        %482 = vmatpush1.xpose.msra.mxu0 0.0
        %483 = vmatprep.subr.mxu0 0.0
        %484 = vmatpush1.xpose.msra.mxu0 0.0
        %485 = vmatprep.subr.mxu0 0.0
        %486 = vmatpush1.xpose.msra.mxu0 0.0
        %487 = vmatprep.subr.mxu0 0.0
        %488 = vmatpush1.xpose.msra.mxu0 0.0
        %489 = vmatprep.subr.mxu0 0.0
        %490 = vmatpush1.xpose.msra.mxu0 0.0
        %491 = vmatprep.subr.mxu0 0.0
        %492 = vmatpush1.xpose.msra.mxu0 0.0
        %493 = vmatprep.subr.mxu0 0.0
        %494 = vmatpush1.xpose.msra.mxu0 0.0
        %495 = vmatprep.subr.mxu0 0.0
        %496 = vmatpush1.xpose.msra.mxu0 0.0
        %497 = vmatprep.subr.mxu0 0.0
        %498 = vmatpush1.xpose.msra.mxu0 0.0
        %499 = vmatprep.subr.mxu0 0.0
        %500 = vmatpush1.xpose.msra.mxu0 0.0
        %501 = vmatprep.subr.mxu0 0.0
        %502 = vmatpush1.xpose.msra.mxu0 0.0
        %503 = vmatprep.subr.mxu0 0.0
        %504 = vmatpush1.xpose.msra.mxu0 0.0
        %505 = vmatprep.subr.mxu0 0.0
        %506 = vmatpush1.xpose.msra.mxu0 0.0
        %507 = vmatprep.subr.mxu0 0.0
        %508 = vmatpush1.xpose.msra.mxu0 0.0
        %509 = vmatprep.subr.mxu0 0.0
        %510 = vmatpush1.xpose.msra.mxu0 0.0
        %511 = vmatprep.subr.mxu0 0.0
        %512 = vmatpush1.xpose.msra.mxu0 0.0
        %513 = vmatprep.mubr.f32.mxu0 %v417
        %514 = vmatmul.mubr.f32.gmra.mrb[0].mxu0 %v415
        %v515 = vpop.f32.mrb[0].mxu0
        %v516 = vadd.f32 0.0, %v515
        %v517 = vpop.f32.mrb[0].mxu0
        %518 = vdwg.mxu0
        %519 = vmatprep.subr.mxu0 %v230
        %520 = vmatpush1.xpose.msra.mxu0 %v215
        %521 = vmatprep.subr.mxu0 0.0
        %522 = vmatpush1.xpose.msra.mxu0 0.0
        %523 = vmatprep.subr.mxu0 0.0
        %524 = vmatpush1.xpose.msra.mxu0 0.0
        %525 = vmatprep.subr.mxu0 0.0
        %526 = vmatpush1.xpose.msra.mxu0 0.0
        %527 = vmatprep.subr.mxu0 0.0
        %528 = vmatpush1.xpose.msra.mxu0 0.0
        %529 = vmatprep.subr.mxu0 0.0
        %530 = vmatpush1.xpose.msra.mxu0 0.0
        %531 = vmatprep.subr.mxu0 0.0
        %532 = vmatpush1.xpose.msra.mxu0 0.0
        %533 = vmatprep.subr.mxu0 0.0
        %534 = vmatpush1.xpose.msra.mxu0 0.0
        %535 = vmatprep.subr.mxu0 0.0
        %536 = vmatpush1.xpose.msra.mxu0 0.0
        %537 = vmatprep.subr.mxu0 0.0
        %538 = vmatpush1.xpose.msra.mxu0 0.0
        %539 = vmatprep.subr.mxu0 0.0
        %540 = vmatpush1.xpose.msra.mxu0 0.0
        %541 = vmatprep.subr.mxu0 0.0
        %542 = vmatpush1.xpose.msra.mxu0 0.0
        %543 = vmatprep.subr.mxu0 0.0
        %544 = vmatpush1.xpose.msra.mxu0 0.0
        %545 = vmatprep.subr.mxu0 0.0
        %546 = vmatpush1.xpose.msra.mxu0 0.0
        %547 = vmatprep.subr.mxu0 0.0
        %548 = vmatpush1.xpose.msra.mxu0 0.0
        %549 = vmatprep.subr.mxu0 0.0
        %550 = vmatpush1.xpose.msra.mxu0 0.0
        %551 = vmatprep.subr.mxu0 0.0
        %552 = vmatpush1.xpose.msra.mxu0 0.0
        %553 = vmatprep.subr.mxu0 0.0
        %554 = vmatpush1.xpose.msra.mxu0 0.0
        %555 = vmatprep.subr.mxu0 0.0
        %556 = vmatpush1.xpose.msra.mxu0 0.0
        %557 = vmatprep.subr.mxu0 0.0
        %558 = vmatpush1.xpose.msra.mxu0 0.0
        %559 = vmatprep.subr.mxu0 0.0
        %560 = vmatpush1.xpose.msra.mxu0 0.0
        %561 = vmatprep.subr.mxu0 0.0
        %562 = vmatpush1.xpose.msra.mxu0 0.0
        %563 = vmatprep.subr.mxu0 0.0
        %564 = vmatpush1.xpose.msra.mxu0 0.0
        %565 = vmatprep.subr.mxu0 0.0
        %566 = vmatpush1.xpose.msra.mxu0 0.0
        %567 = vmatprep.subr.mxu0 0.0
        %568 = vmatpush1.xpose.msra.mxu0 0.0
        %569 = vmatprep.subr.mxu0 0.0
        %570 = vmatpush1.xpose.msra.mxu0 0.0
        %571 = vmatprep.subr.mxu0 0.0
        %572 = vmatpush1.xpose.msra.mxu0 0.0
        %573 = vmatprep.subr.mxu0 0.0
        %574 = vmatpush1.xpose.msra.mxu0 0.0
        %575 = vmatprep.subr.mxu0 0.0
        %576 = vmatpush1.xpose.msra.mxu0 0.0
        %577 = vmatprep.subr.mxu0 0.0
        %578 = vmatpush1.xpose.msra.mxu0 0.0
        %579 = vmatprep.subr.mxu0 0.0
        %580 = vmatpush1.xpose.msra.mxu0 0.0
        %581 = vmatprep.subr.mxu0 0.0
        %582 = vmatpush1.xpose.msra.mxu0 0.0
        %583 = vmatprep.mubr.f32.mxu0 %v421
        %584 = vmatmul.mubr.f32.gmra.mrb[0].mxu0 %v419
        %v585 = vpop.f32.mrb[0].mxu0
        %v586 = vadd.f32 %v516, %v585
        %v587 = vpop.f32.mrb[0].mxu0
        %588 = vdwg.mxu0
        %v589 = vadd.f32 %v446, %v586
        %vm590 = vcmask 24576
        %591 = vst.msk [vmem:[#allocation4] sm:$0x1] %vm590, %v589
        %592 = vst.msk [vmem:[#allocation2] sm:$0x1] %vm434, %v397
        // Predicated region
        $region41: #{tpu_custom_call.1} parent=31 // pred_check
          %p593 = pneg %p205
        $region42: #{tpu_custom_call.1} parent=31 // pred_check_branch
          %595 = sbr.rel (%p593) target = $region44
        $region43: #{tpu_custom_call.1} parent=31 // pred_region
          %v596 = vld [vmem:[#allocation4] sm:$0x1]
          %v597 = vld [vmem:[#allocation3] sm:$0x1]
          %599 = vset.pattern.permute.xlu0 0
          %600 = vperm.xlu0 %599, %v597
          %v601 = vpop.permute.xlu0 %600
          %v603 = vlaneseq
          %v604 = vshrl.u32 %v603, 7
          %v605 = vsub.s32 0, %v604
          %v606 = vrot.slane %v601, %v605
          %v607 = vrcp.pop %v606
          %v608 = vmul.f32 %v596, %v607
          %609 = vst.msk [vmem:[%s203] sm:$0x1] %vm590, %v608
        $region44: #{tpu_custom_call.1} parent=31 // pred_fallthru
          _
        %s610 = sand.u32 %s112, 1
        %s611 = scalar_lea.sflag [#allocation8], %s610
        %s612 = sand.u32 %s112, 1
        %s613 = scalar_lea.vmem [#allocation9], %s612
        // Predicated region
        $region45: #{tpu_custom_call.1} parent=31 // pred_check
          %p614 = pneg %p122
        $region46: #{tpu_custom_call.1} parent=31 // pred_check_branch
          %616 = sbr.rel (%p614) target = $region48
        $region47: #{tpu_custom_call.1} parent=31 // pred_region
          %s618 = ssub.s32 16, 16
          %619 = vsyncadd %s611, %s618
          %s620 = smul.addr %s26, 16
          %s621 = scalar_lea.hbm %s3, %s620
          %s623 = sshll.u32 %s613, 4
          %s624 = int_to_ptr.vmem [resolvable:$true] %s623
          %626 = dma.vmem_to_hbm [thread:$0]  %s624, 16, %s621, %s611
        $region48: #{tpu_custom_call.1} parent=31 // pred_fallthru
          _
      $region32: #{tpu_custom_call.1} parent=5 // pred_fallthru
        _
      %p627 = scmp.le.s32.totalorder 2, %s17
      // Predicated region
      $region49: #{tpu_custom_call.1} parent=5 // pred_check
        %p628 = pneg %p627
      $region50: #{tpu_custom_call.1} parent=5 // pred_check_branch
        %630 = sbr.rel (%p628) target = $region52
      $region51: #{tpu_custom_call.1} parent=5 // pred_region
        %s631 = ssub.s32 %s17, 2
        // Predicated region
        $region53: #{tpu_custom_call.1} parent=51 // pred_check
          %p632 = pneg %p128
        $region54: #{tpu_custom_call.1} parent=51 // pred_check_branch
          %634 = sbr.rel (%p632) target = $region56
        $region55: #{tpu_custom_call.1} parent=51 // pred_region
          %s635 = sand.u32 %s113, 1
          %s636 = scalar_lea.sflag [#allocation8], %s635
          %s637 = sand.u32 %s113, 1
          %s638 = scalar_lea.vmem [#allocation9], %s637
          %639 = dma.done %s636, 16
        $region56: #{tpu_custom_call.1} parent=51 // pred_fallthru
          _
      $region52: #{tpu_custom_call.1} parent=5 // pred_fallthru
        _
    $region6: #{tpu_custom_call.1} parent=1 // loop_footer
      %s21 = sadd.s32 1, %s17
    $region7: #{tpu_custom_call.1} parent=1 // loop_footer_branch
      %16 = sbr.rel target = $region3
    $region8: #{tpu_custom_call.1} parent=1 // loop_exit
      _
    %640 = vsyncpa [#allocation7], 1
    %s641 = scalar_lea.sflag [#allocation7], 1
    %642 = vsyncpa %s641, 1
    %643 = vsyncpa [#allocation8], 1
    %s644 = scalar_lea.sflag [#allocation8], 1
    %645 = vsyncpa %s644, 1

</llo_original>
